<compile_context>
chip_gen: v5e
topology: v5e:2x2
jax: 0.10.0
libtpu: 0.0.40
codegen_flags: <defaults>
</compile_context>

<pallas_src>
import jax
import jax.numpy as jnp
from jax import lax
from jax.experimental import pallas as pl
from jax.experimental.pallas import tpu as pltpu


# ----------------------------------------------------------------------------- kernel


def _squeeze_chunk(L):
    """Largest lane-chunk (<=512) that divides L (wrapper pads L to a 128 multiple)."""
    for c in (512, 256, 128):
        if L % c == 0:
            return c
    return L


def se_block_kernel(x_ref, w1t_ref, w2t_ref, o_ref):
    # x_ref / o_ref : (B_TILE, C, L)   native dtype
    # w1t_ref       : (C, H) = W1.T * (1/L)   (H = C // reduction, 1/L pre-folded)
    # w2t_ref       : (H, C) = W2.T
    bt, C, L = x_ref.shape
    chunk = _squeeze_chunk(L)
    n_chunks = L // chunk

    # --- squeeze: sum over L, upcasting only one chunk to f32 at a time ---------
    def body(i, acc):
        start = pl.multiple_of(i * chunk, chunk)
        xs = x_ref[:, :, pl.ds(start, chunk)]
        return acc + jnp.sum(xs.astype(jnp.float32), axis=2)

    y = lax.fori_loop(0, n_chunks, body,
                      jnp.zeros((bt, C), jnp.float32), unroll=True)    # (B_TILE, C)

    # --- excite: 1x1 conv (C->H), ReLU, 1x1 conv (H->C), sigmoid (tiny MXU dots) -
    h = jnp.dot(y, w1t_ref[...], preferred_element_type=jnp.float32)   # (B_TILE, H)
    h = jnp.maximum(h, 0.0)
    s = jnp.dot(h, w2t_ref[...], preferred_element_type=jnp.float32)   # (B_TILE, C)
    s = jax.nn.sigmoid(s)

    # --- scale: re-read the VMEM input tile, fused multiply + lane-dense store ---
    gate = s.astype(o_ref.dtype)[:, :, None]                           # (B_TILE, C, 1)
    o_ref[...] = x_ref[...] * gate


# ---------------------------------------------------------------------------- sizing


def _vmem_capacity_bytes():
    """Best-effort physical VMEM query; conservative (v7x) fallback."""
    try:
        info = pltpu.get_tpu_info()
        for attr in ("vmem_capacity_bytes", "vmem_size_bytes", "vmem_bytes"):
            v = getattr(info, attr, None)
            if v:
                return int(v)
    except Exception:
        pass
    return 64 * 1024 * 1024


def _vmem_budgets():
    """(tile_budget_bytes, vmem_limit_bytes) per TPU generation."""
    cap = _vmem_capacity_bytes()
    if cap >= 100 * 1024 * 1024:          # v5e / v6e: 128 MiB physical VMEM
        return 48 * 1024 * 1024, 100 * 1024 * 1024
    # v7x: 64 MiB physical, 32 MiB scoped default
    return 16 * 1024 * 1024, 32 * 1024 * 1024


def _pick_batch_tile(B, C, L, itemsize, H, tile_budget_bytes):
    """Largest batch tile whose live VMEM footprint fits the per-generation budget.

    Per-batch-element footprint:
      * double-buffered input slab  : 2 * C * L * itemsize
      * double-buffered output slab : 2 * C * L * itemsize
      * f32 squeeze chunk temporary : C * chunk * 4   (only one chunk live at a time)
      * f32 accumulator / gate      : ~4 * C * 4
    Resident weights (double-buffered constant-index blocks) are subtracted once.
    Keeps the grid length >= 2 (megacore overlap) and prefers an EVEN grid length so
    v7x's two TensorCores each get the same number of slabs.
    """
    chunk = _squeeze_chunk(L)
    weight_bytes = 2 * 2 * (C * H * 4)                       # two weights, 2 bufs each
    budget = max(1, tile_budget_bytes - weight_bytes)
    per_batch = 4 * C * L * itemsize + C * chunk * 4 + 4 * C * 4
    cap = max(1, budget // per_batch)
    cap = min(cap, B)
    if B >= 2:
        cap = min(cap, max(1, B // 2))                       # >= 2 grid steps
    # First pass: exact divide AND even grid length (balanced across 2 TCs on v7x).
    for bt in range(cap, 0, -1):
        if B % bt == 0 and (B // bt) % 2 == 0:
            return bt
    # Second pass: exact divide (no padded remainder block).
    for bt in range(cap, 0, -1):
        if B % bt == 0:
            return bt
    # Fallback: padded remainder block.  Benign: padded rows are read uninitialized
    # and their results discarded; per-batch independence means no contamination —
    # do NOT add any cross-batch reduction to this kernel without revisiting this.
    return cap


# --------------------------------------------------------------------------- wrapper


def se_block(x, w1, w2):
    """x: (B, C, L); w1: (H, C); w2: (C, H).  Returns (B, C, L) = x * SE-gate."""
    B, C, L = x.shape
    H = w1.shape[0]
    assert w1.shape == (H, C) and w2.shape == (C, H)

    # Glue: pre-transpose the tiny weights and fold the 1/L mean scale into W1^T.
    # 1/L uses the TRUE L, so wrapper-side zero padding of L never perturbs the mean.
    w1t = (jnp.transpose(w1) * (1.0 / L)).astype(jnp.float32)   # (C, H)
    w2t = jnp.transpose(w2).astype(jnp.float32)                 # (H, C)

    # Lane-dense stores: pad L to a multiple of 128 if needed (zeros, sliced back).
    L_pad = ((L + 127) // 128) * 128
    x_in = x if L_pad == L else jnp.pad(x, ((0, 0), (0, 0), (0, L_pad - L)))

    tile_budget, vmem_limit = _vmem_budgets()
    bt = _pick_batch_tile(B, C, L_pad, x.dtype.itemsize, H, tile_budget)
    grid = (pl.cdiv(B, bt),)

    cost = pl.CostEstimate(
        flops=3 * B * C * L_pad + 4 * B * C * H,
        transcendentals=B * C,
        bytes_accessed=2 * B * C * L_pad * x.dtype.itemsize + 2 * C * H * 4,
    )

    out = pl.pallas_call(
        se_block_kernel,
        out_shape=jax.ShapeDtypeStruct((B, C, L_pad), x.dtype),
        grid_spec=pltpu.PrefetchScalarGridSpec(
            num_scalar_prefetch=0,
            grid=grid,
            in_specs=[
                pl.BlockSpec((bt, C, L_pad), lambda b: (b, 0, 0)),
                pl.BlockSpec((C, H), lambda b: (0, 0)),   # constant index: resident
                pl.BlockSpec((H, C), lambda b: (0, 0)),   # constant index: resident
            ],
            out_specs=pl.BlockSpec((bt, C, L_pad), lambda b: (b, 0, 0)),
        ),
        compiler_params=pltpu.CompilerParams(
            dimension_semantics=("parallel",),            # batch axis -> megacore
            vmem_limit_bytes=vmem_limit,                  # generation-aware
        ),
        cost_estimate=cost,
    )(x_in, w1t, w2t)

    if L_pad != L:
        out = out[:, :, :L]
    return out


def se_block_ref(x, w1, w2):
    """Pure-JAX reference matching the PyTorch forward."""
    y = jnp.mean(x, axis=2, keepdims=True)                  # (B, C, 1)
    h = jnp.maximum(jnp.einsum("hc,bcl->bhl", w1, y), 0.0)  # (B, H, 1)
    s = jax.nn.sigmoid(jnp.einsum("ch,bhl->bcl", w2, h))    # (B, C, 1)
    return x * s


if __name__ == "__main__":
    B, C, L = 8, 64, 128
    reduction = 16
    H = C // reduction

    key = jax.random.PRNGKey(0)
    kx, k1, k2 = jax.random.split(key, 3)

    x = jax.random.normal(kx, (B, C, L), dtype=jnp.float32)
    # Deterministic synthetic weights (conv1d kernel_size=1, no bias).
    w1 = jax.random.normal(k1, (H, C), dtype=jnp.float32) * (1.0 / C) ** 0.5
    w2 = jax.random.normal(k2, (C, H), dtype=jnp.float32) * (1.0 / H) ** 0.5

    out = jax.block_until_ready(se_block(x, w1, w2))
    ref = jax.block_until_ready(se_block_ref(x, w1, w2))

    assert out.shape == (B, C, L)
    assert jnp.allclose(out, ref, atol=1e-5, rtol=1e-5)
    print("KERNEL_OK")
</pallas_src>

<mosaic_0001>
module attributes {stable_mosaic.version = 11 : i64} {
  func.func @se_block_kernel(%arg0: i32, %arg1: memref<4x64x128xf32, #tpu.memory_space<vmem>>, %arg2: memref<64x4xf32, #tpu.memory_space<vmem>>, %arg3: memref<4x64xf32, #tpu.memory_space<vmem>>, %arg4: memref<4x64x128xf32, #tpu.memory_space<vmem>>) attributes {dimension_semantics = [#tpu.dimension_semantics<parallel>], iteration_bounds = array<i64: 2>, scalar_prefetch = 0 : i64, scratch_operands = 0 : i64, tpu.core_type = #tpu.core_type<tc>, window_params = [{transform_indices = @transform_0, window_bounds = array<i64: 4, 64, 128>}, {pipeline_mode = #tpu.pipeline_mode<synchronous>, transform_indices = @transform_1, window_bounds = array<i64: 64, 4>}, {pipeline_mode = #tpu.pipeline_mode<synchronous>, transform_indices = @transform_2, window_bounds = array<i64: 4, 64>}, {transform_indices = @transform_3, window_bounds = array<i64: 4, 64, 128>}]} {
    %cst = arith.constant 0.000000e+00 : f32
    %0 = vector.broadcast %cst : f32 to vector<4x64xf32>
    %c0_i32 = arith.constant 0 : i32
    %c128_i32 = arith.constant 128 : i32
    %1 = arith.muli %c0_i32, %c128_i32 : i32
    %2 = tpu.assume_multiple %1, 128 : i32
    %c0 = arith.constant 0 : index
    %c0_0 = arith.constant 0 : index
    %3 = arith.index_cast %2 : i32 to index
    %4 = vector.load %arg1[%c0, %c0_0, %3] : memref<4x64x128xf32, #tpu.memory_space<vmem>>, vector<4x64x128xf32>
    %cst_1 = arith.constant dense<0.000000e+00> : vector<4x64xf32>
    %5 = vector.multi_reduction <add>, %4, %cst_1 [2] : vector<4x64x128xf32> to vector<4x64xf32>
    %6 = arith.addf %0, %5 : vector<4x64xf32>
    %c1_i32 = arith.constant 1 : i32
    %c0_2 = arith.constant 0 : index
    %c0_3 = arith.constant 0 : index
    %7 = vector.load %arg2[%c0_2, %c0_3] : memref<64x4xf32, #tpu.memory_space<vmem>>, vector<64x4xf32>
    %cst_4 = arith.constant dense<0.000000e+00> : vector<4x4xf32>
    %8 = tpu.matmul %6, %7, %cst_4 {dimension_numbers = #tpu.dot_dimension_numbers<[1], [0], [0], [1], [0, 0, 1, 1], [], []>} : vector<4x64xf32>, vector<64x4xf32>, vector<4x4xf32> -> vector<4x4xf32>
    %cst_5 = arith.constant 0.000000e+00 : f32
    %9 = vector.broadcast %cst_5 : f32 to vector<4x4xf32>
    %10 = arith.maximumf %8, %9 : vector<4x4xf32>
    %c0_6 = arith.constant 0 : index
    %c0_7 = arith.constant 0 : index
    %11 = vector.load %arg3[%c0_6, %c0_7] : memref<4x64xf32, #tpu.memory_space<vmem>>, vector<4x64xf32>
    %cst_8 = arith.constant dense<0.000000e+00> : vector<4x64xf32>
    %12 = tpu.matmul %10, %11, %cst_8 {dimension_numbers = #tpu.dot_dimension_numbers<[1], [0], [0], [1], [0, 0, 1, 1], [], []>} : vector<4x4xf32>, vector<4x64xf32>, vector<4x64xf32> -> vector<4x64xf32>
    %13 = arith.negf %12 : vector<4x64xf32>
    %14 = math.exp %13 : vector<4x64xf32>
    %cst_9 = arith.constant 1.000000e+00 : f32
    %15 = vector.broadcast %cst_9 : f32 to vector<4x64xf32>
    %16 = arith.addf %15, %14 : vector<4x64xf32>
    %17 = arith.divf %15, %16 : vector<4x64xf32>
    %18 = vector.shape_cast %17 : vector<4x64xf32> to vector<4x64x1xf32>
    %c0_10 = arith.constant 0 : index
    %c0_11 = arith.constant 0 : index
    %c0_12 = arith.constant 0 : index
    %19 = vector.load %arg1[%c0_10, %c0_11, %c0_12] : memref<4x64x128xf32, #tpu.memory_space<vmem>>, vector<4x64x128xf32>
    %20 = vector.broadcast %18 : vector<4x64x1xf32> to vector<4x64x128xf32>
    %21 = arith.mulf %19, %20 : vector<4x64x128xf32>
    %c0_13 = arith.constant 0 : index
    %c0_14 = arith.constant 0 : index
    %c0_15 = arith.constant 0 : index
    %22 = vector.load %arg4[%c0_13, %c0_14, %c0_15] : memref<4x64x128xf32, #tpu.memory_space<vmem>>, vector<4x64x128xf32>
    tpu.vector_store %arg4[%c0_13, %c0_14, %c0_15], %21 {strides = array<i32>} : memref<4x64x128xf32, #tpu.memory_space<vmem>>, vector<4x64x128xf32>,
    return
  }
  func.func @transform_0(%arg0: i32) -> (i32, i32, i32) {
    %c0_i32 = arith.constant 0 : i32
    %c0_i32_0 = arith.constant 0 : i32
    %c0_i32_1 = arith.constant 0 : i32
    return %arg0, %c0_i32, %c0_i32_0 : i32, i32, i32
  }
  func.func @transform_1(%arg0: i32) -> (i32, i32) {
    %c0_i32 = arith.constant 0 : i32
    %c0_i32_0 = arith.constant 0 : i32
    %c0_i32_1 = arith.constant 0 : i32
    return %c0_i32, %c0_i32_0 : i32, i32
  }
  func.func @transform_2(%arg0: i32) -> (i32, i32) {
    %c0_i32 = arith.constant 0 : i32
    %c0_i32_0 = arith.constant 0 : i32
    %c0_i32_1 = arith.constant 0 : i32
    return %c0_i32, %c0_i32_0 : i32, i32
  }
  func.func @transform_3(%arg0: i32) -> (i32, i32, i32) {
    %c0_i32 = arith.constant 0 : i32
    %c0_i32_0 = arith.constant 0 : i32
    %c0_i32_1 = arith.constant 0 : i32
    return %arg0, %c0_i32, %c0_i32_0 : i32, i32, i32
  }
}

</mosaic_0001>

<llo_original>
// kernel: tpu_custom_call.1
$region0: #{tpu_custom_call.1}
  #allocation0 [shape = 'u32[]', space=smem, size = 0x4, offset = 0x4, fixed_abs, tag = 'smem constant byte address 0x4 - core index']
  #allocation1 [shape = 'u32[72,128]{1,0:T(1,128)}', space=vmem, size = 0x9000, scoped, tag = 'internal scratch']
  %s0 = inlined_call_operand.hbm [shape: f32[8,64,128], index: 0, kind: input, shape index: {}]
  %s1 = inlined_call_operand.vmem [shape: f32[64,4], index: 1, kind: input, shape index: {}]
  %s2 = inlined_call_operand.vmem [shape: f32[4,64], index: 2, kind: input, shape index: {}]
  %s3 = inlined_call_operand.hbm [shape: f32[8,64,128], index: 3, kind: output, shape index: {}]
  %s4 = sld [smem:[#allocation0]]
  $region49: #{tpu_custom_call.1} parent=0
    _
  %s6 = ssub.s32 1, %s4
  %s7 = scalar_select 0, %s6, %s4
  $region1: #{tpu_custom_call.1} parent=0
    #allocation2 [shape = 'u8[262144]{0}', space=vmem, size = 0x40000, scoped, tag = 'input window, operand 0']
    #allocation3 [shape = 's32[2]{0}', space=sflag, size = 0x8, scoped, tag = 'scoped memory for tpu_custom_call.1']
    #allocation4 [shape = 's32[2]{0}', space=sflag, size = 0x8, scoped, tag = 'scoped memory for tpu_custom_call.1']
    #allocation5 [shape = 'u8[262144]{0}', space=vmem, size = 0x40000, scoped, tag = 'output window, operand 0']
    %8 = vsyncpa [#allocation3], 0
    %s9 = scalar_lea.sflag [#allocation3], 1
    %10 = vsyncpa %s9, 0
    %11 = vsyncpa [#allocation4], 0
    %s12 = scalar_lea.sflag [#allocation4], 1
    %13 = vsyncpa %s12, 0
    loop: start=0, step=1, limit=4
    $region2: #{tpu_custom_call.1} parent=1 // loop_pre_header
      _
    $region3: #{tpu_custom_call.1} parent=1 // loop_header
      %s15 = sphi 0, %s19
      %p16 = scmp.ge.s32.totalorder %s15, 4
      %s25 = sphi 0, %s27
      %s28 = sphi 0, %s25
      %s29 = sphi 0, %s28
      %s45 = sphi 0, %s29
      %s49 = sphi 0, %s49
      %s51 = sphi 0, %s49
      %s52 = sphi 0, %s51
      %s66 = sphi 0, %s52
      %s70 = sphi 0, %s70
      %s72 = sphi 0, %s70
      %s73 = sphi 0, %s72
      %s87 = sphi 0, %s73
      %s93 = sphi 0, %s95
      %s96 = sphi 0, %s93
      %s97 = sphi 0, %s96
      %s113 = sphi 0, %s97
    $region4: #{tpu_custom_call.1} parent=1 // loop_header_branch
      %18 = sbr.rel (%p16) target = $region8
    $region5: #{tpu_custom_call.1} parent=1 // loop_body
      %s20 = ssub.s32 %s15, 1
      %s21 = ssub.s32 %s15, 2
      %s22 = sadd.s32 %s15, 1
      %s23 = ssub.s32 %s15, %s22
      %p24 = scmp.eq.s32.totalorder %s23, 0
      %s26 = sadd.s32 %s25, 1
      %s27 = scalar_select %p24, %s25, %s26
      %p30 = pneg %p24
      %p31 = scmp.eq.s32.totalorder %s15, 1
      %p32 = por %p30, %p31
      %p33 = scmp.ne.s32.totalorder %s25, %s28
      %p34 = scmp.eq.s32.totalorder %s15, 0
      %p35 = por %p33, %p34
      %p36 = scmp.ne.s32.totalorder %s25, %s28
      %p37 = scmp.eq.s32.totalorder %s20, 1
      %p38 = por %p36, %p37
      %p39 = scmp.ne.s32.totalorder %s28, %s29
      %p40 = scmp.eq.s32.totalorder %s20, 0
      %p41 = por %p39, %p40
      %p42 = scmp.ne.s32.totalorder %s28, %s29
      %p43 = scmp.eq.s32.totalorder %s21, 1
      %p44 = por %p42, %p43
      %p46 = scmp.ne.s32.totalorder %s29, %s45
      %p47 = scmp.eq.s32.totalorder %s21, 0
      %p48 = por %p46, %p47
      %s50 = sadd.s32 %s49, 1
      %p53 = scmp.eq.s32.totalorder %s15, 1
      %p54 = scmp.ne.s32.totalorder %s49, %s51
      %p55 = scmp.eq.s32.totalorder %s15, 0
      %p56 = por %p54, %p55
      %p57 = scmp.ne.s32.totalorder %s49, %s51
      %p58 = scmp.eq.s32.totalorder %s20, 1
      %p59 = por %p57, %p58
      %p60 = scmp.ne.s32.totalorder %s51, %s52
      %p61 = scmp.eq.s32.totalorder %s20, 0
      %p62 = por %p60, %p61
      %p63 = scmp.ne.s32.totalorder %s51, %s52
      %p64 = scmp.eq.s32.totalorder %s21, 1
      %p65 = por %p63, %p64
      %p67 = scmp.ne.s32.totalorder %s52, %s66
      %p68 = scmp.eq.s32.totalorder %s21, 0
      %p69 = por %p67, %p68
      %s71 = sadd.s32 %s70, 1
      %p74 = scmp.eq.s32.totalorder %s15, 1
      %p75 = scmp.ne.s32.totalorder %s70, %s72
      %p76 = scmp.eq.s32.totalorder %s15, 0
      %p77 = por %p75, %p76
      %p78 = scmp.ne.s32.totalorder %s70, %s72
      %p79 = scmp.eq.s32.totalorder %s20, 1
      %p80 = por %p78, %p79
      %p81 = scmp.ne.s32.totalorder %s72, %s73
      %p82 = scmp.eq.s32.totalorder %s20, 0
      %p83 = por %p81, %p82
      %p84 = scmp.ne.s32.totalorder %s72, %s73
      %p85 = scmp.eq.s32.totalorder %s21, 1
      %p86 = por %p84, %p85
      %p88 = scmp.ne.s32.totalorder %s73, %s87
      %p89 = scmp.eq.s32.totalorder %s21, 0
      %p90 = por %p88, %p89
      %s91 = ssub.s32 %s15, %s22
      %p92 = scmp.eq.s32.totalorder %s91, 0
      %s94 = sadd.s32 %s93, 1
      %s95 = scalar_select %p92, %s93, %s94
      %p98 = pneg %p92
      %p99 = scmp.eq.s32.totalorder %s15, 1
      %p100 = por %p98, %p99
      %p101 = scmp.ne.s32.totalorder %s93, %s96
      %p102 = scmp.eq.s32.totalorder %s15, 0
      %p103 = por %p101, %p102
      %p104 = scmp.ne.s32.totalorder %s93, %s96
      %p105 = scmp.eq.s32.totalorder %s20, 1
      %p106 = por %p104, %p105
      %p107 = scmp.ne.s32.totalorder %s96, %s97
      %p108 = scmp.eq.s32.totalorder %s20, 0
      %p109 = por %p107, %p108
      %p110 = scmp.ne.s32.totalorder %s96, %s97
      %p111 = scmp.eq.s32.totalorder %s21, 1
      %p112 = por %p110, %p111
      %p114 = scmp.ne.s32.totalorder %s97, %s113
      %p115 = scmp.eq.s32.totalorder %s21, 0
      %p116 = por %p114, %p115
      %p117 = scmp.le.s32.totalorder 1, %s15
      %p118 = scmp.lt.s32.totalorder %s15, 3
      %p119 = pnand %p117, %p118
      %p120 = pneg %p119
      // Predicated region
      $region9: #{tpu_custom_call.1} parent=5 // pred_check
        _
      $region10: #{tpu_custom_call.1} parent=5 // pred_check_branch
        %122 = sbr.rel (%p119) target = $region12
      $region11: #{tpu_custom_call.1} parent=5 // pred_region
        %s123 = ssub.s32 %s15, 1
        // Predicated region
        $region13: #{tpu_custom_call.1} parent=11 // pred_check
          %p124 = pneg %p62
        $region14: #{tpu_custom_call.1} parent=11 // pred_check_branch
          %126 = sbr.rel (%p124) target = $region16
        $region15: #{tpu_custom_call.1} parent=11 // pred_region
          _
        $region16: #{tpu_custom_call.1} parent=11 // pred_fallthru
          _
        // Predicated region
        $region17: #{tpu_custom_call.1} parent=11 // pred_check
          %p127 = pneg %p83
        $region18: #{tpu_custom_call.1} parent=11 // pred_check_branch
          %129 = sbr.rel (%p127) target = $region20
        $region19: #{tpu_custom_call.1} parent=11 // pred_region
          _
        $region20: #{tpu_custom_call.1} parent=11 // pred_fallthru
          _
      $region12: #{tpu_custom_call.1} parent=5 // pred_fallthru
        _
      %p130 = scmp.lt.s32.totalorder %s15, 2
      // Predicated region
      $region21: #{tpu_custom_call.1} parent=5 // pred_check
        %p131 = pneg %p130
      $region22: #{tpu_custom_call.1} parent=5 // pred_check_branch
        %133 = sbr.rel (%p131) target = $region24
      $region23: #{tpu_custom_call.1} parent=5 // pred_region
        // Predicated region
        $region25: #{tpu_custom_call.1} parent=23 // pred_check
          %p134 = pneg %p35
        $region26: #{tpu_custom_call.1} parent=23 // pred_check_branch
          %136 = sbr.rel (%p134) target = $region28
        $region27: #{tpu_custom_call.1} parent=23 // pred_region
          %s137 = sand.u32 %s25, 1
          %s138 = scalar_lea.sflag [#allocation3], %s137
          %s139 = sand.u32 %s25, 1
          %s140 = smul.addr %s139, 256
          %s141 = scalar_lea.vmem [#allocation2], %s140
          %s142 = smul.u32 4, %s15
          %144 = vsyncadd %s138, 0
          %s145 = smul.addr %s142, 8
          %s146 = smul.addr %s145, 8
          %s147 = scalar_lea.hbm %s0, %s146
          %s148 = sshll.u32 %s147, 4
          %s149 = int_to_ptr.hbm [resolvable:$true] %s148
          %s150 = sshll.u32 %s141, 4
          %s151 = int_to_ptr.vmem [resolvable:$true] %s150
          %156 = dma.hbm_to_vmem [thread:$0]  %s149, 4096, %s151, %s138, 128, 128, 8
        $region28: #{tpu_custom_call.1} parent=23 // pred_fallthru
          _
      $region24: #{tpu_custom_call.1} parent=5 // pred_fallthru
        _
      %p157 = scmp.le.s32.totalorder 1, %s15
      %p158 = scmp.lt.s32.totalorder %s15, 3
      %p159 = pnand %p157, %p158
      %p160 = pneg %p159
      // Predicated region
      $region29: #{tpu_custom_call.1} parent=5 // pred_check
        _
      $region30: #{tpu_custom_call.1} parent=5 // pred_check_branch
        %162 = sbr.rel (%p159) target = $region32
      $region31: #{tpu_custom_call.1} parent=5 // pred_region
        %s163 = ssub.s32 %s15, 1
        %s164 = sand.u32 %s28, 1
        %s165 = scalar_lea.sflag [#allocation3], %s164
        %s166 = sand.u32 %s28, 1
        %s167 = smul.addr %s166, 256
        %s168 = scalar_lea.vmem [#allocation2], %s167
        // Predicated region
        $region33: #{tpu_custom_call.1} parent=31 // pred_check
          %p169 = pneg %p41
        $region34: #{tpu_custom_call.1} parent=31 // pred_check_branch
          %171 = sbr.rel (%p169) target = $region36
        $region35: #{tpu_custom_call.1} parent=31 // pred_region
          %173 = dma.done %s165, 4096
        $region36: #{tpu_custom_call.1} parent=31 // pred_fallthru
          _
        %s174 = sand.u32 %s28, 1
        %s175 = scalar_lea.sflag [#allocation3], %s174
        %s176 = sand.u32 %s28, 1
        %s177 = smul.addr %s176, 256
        %s178 = scalar_lea.vmem [#allocation2], %s177
        %p179 = pneg %p41
        %p180 = pneg %p38
        %p181 = pneg %p62
        %p182 = pneg %p59
        %p183 = pneg %p83
        %p184 = pneg %p80
        %p185 = pneg %p109
        %p186 = pneg %p106
        %s187 = sand.u32 %s96, 1
        %s188 = scalar_lea.sflag [#allocation4], %s187
        %s189 = sand.u32 %s96, 1
        %s190 = smul.addr %s189, 256
        %s191 = scalar_lea.vmem [#allocation5], %s190
        %s192 = smul.u32 4, %s20
        %s193 = smul.u32 4, %s20
        %v194 = vld [vmem:[%s168] sm:$0xff]
        %v195 = vld [vmem:[%s168 + $0x8] sm:$0xff]
        %v196 = vld [vmem:[%s168 + $0x10] sm:$0xff]
        %v197 = vld [vmem:[%s168 + $0x18] sm:$0xff]
        %v198 = vld [vmem:[%s168 + $0x20] sm:$0xff]
        %v199 = vld [vmem:[%s168 + $0x28] sm:$0xff]
        %v200 = vld [vmem:[%s168 + $0x30] sm:$0xff]
        %v201 = vld [vmem:[%s168 + $0x38] sm:$0xff]
        %v202 = vld [vmem:[%s168 + $0x40] sm:$0xff]
        %v203 = vld [vmem:[%s168 + $0x48] sm:$0xff]
        %v204 = vld [vmem:[%s168 + $0x50] sm:$0xff]
        %v205 = vld [vmem:[%s168 + $0x58] sm:$0xff]
        %v206 = vld [vmem:[%s168 + $0x60] sm:$0xff]
        %v207 = vld [vmem:[%s168 + $0x68] sm:$0xff]
        %v208 = vld [vmem:[%s168 + $0x70] sm:$0xff]
        %v209 = vld [vmem:[%s168 + $0x78] sm:$0xff]
        %v210 = vld [vmem:[%s168 + $0x80] sm:$0xff]
        %v211 = vld [vmem:[%s168 + $0x88] sm:$0xff]
        %v212 = vld [vmem:[%s168 + $0x90] sm:$0xff]
        %v213 = vld [vmem:[%s168 + $0x98] sm:$0xff]
        %v214 = vld [vmem:[%s168 + $0xa0] sm:$0xff]
        %v215 = vld [vmem:[%s168 + $0xa8] sm:$0xff]
        %v216 = vld [vmem:[%s168 + $0xb0] sm:$0xff]
        %v217 = vld [vmem:[%s168 + $0xb8] sm:$0xff]
        %v218 = vld [vmem:[%s168 + $0xc0] sm:$0xff]
        %v219 = vld [vmem:[%s168 + $0xc8] sm:$0xff]
        %v220 = vld [vmem:[%s168 + $0xd0] sm:$0xff]
        %v221 = vld [vmem:[%s168 + $0xd8] sm:$0xff]
        %v222 = vld [vmem:[%s168 + $0xe0] sm:$0xff]
        %v223 = vld [vmem:[%s168 + $0xe8] sm:$0xff]
        %v224 = vld [vmem:[%s168 + $0xf0] sm:$0xff]
        %v225 = vld [vmem:[%s168 + $0xf8] sm:$0xff]
        %226 = vadd.xlane.f32.xlu0 %v194
        %v227 = vpop.xlane.xlu0 %226
        %228 = vadd.xlane.f32.xlu0 %v195
        %v229 = vpop.xlane.xlu0 %228
        %230 = vadd.xlane.f32.xlu0 %v196
        %v231 = vpop.xlane.xlu0 %230
        %232 = vadd.xlane.f32.xlu0 %v197
        %v233 = vpop.xlane.xlu0 %232
        %234 = vadd.xlane.f32.xlu0 %v198
        %v235 = vpop.xlane.xlu0 %234
        %236 = vadd.xlane.f32.xlu0 %v199
        %v237 = vpop.xlane.xlu0 %236
        %238 = vadd.xlane.f32.xlu0 %v200
        %v239 = vpop.xlane.xlu0 %238
        %240 = vadd.xlane.f32.xlu0 %v201
        %v241 = vpop.xlane.xlu0 %240
        %242 = vadd.xlane.f32.xlu0 %v202
        %v243 = vpop.xlane.xlu0 %242
        %244 = vadd.xlane.f32.xlu0 %v203
        %v245 = vpop.xlane.xlu0 %244
        %246 = vadd.xlane.f32.xlu0 %v204
        %v247 = vpop.xlane.xlu0 %246
        %248 = vadd.xlane.f32.xlu0 %v205
        %v249 = vpop.xlane.xlu0 %248
        %250 = vadd.xlane.f32.xlu0 %v206
        %v251 = vpop.xlane.xlu0 %250
        %252 = vadd.xlane.f32.xlu0 %v207
        %v253 = vpop.xlane.xlu0 %252
        %254 = vadd.xlane.f32.xlu0 %v208
        %v255 = vpop.xlane.xlu0 %254
        %256 = vadd.xlane.f32.xlu0 %v209
        %v257 = vpop.xlane.xlu0 %256
        %258 = vadd.xlane.f32.xlu0 %v210
        %v259 = vpop.xlane.xlu0 %258
        %260 = vadd.xlane.f32.xlu0 %v211
        %v261 = vpop.xlane.xlu0 %260
        %262 = vadd.xlane.f32.xlu0 %v212
        %v263 = vpop.xlane.xlu0 %262
        %264 = vadd.xlane.f32.xlu0 %v213
        %v265 = vpop.xlane.xlu0 %264
        %266 = vadd.xlane.f32.xlu0 %v214
        %v267 = vpop.xlane.xlu0 %266
        %268 = vadd.xlane.f32.xlu0 %v215
        %v269 = vpop.xlane.xlu0 %268
        %270 = vadd.xlane.f32.xlu0 %v216
        %v271 = vpop.xlane.xlu0 %270
        %272 = vadd.xlane.f32.xlu0 %v217
        %v273 = vpop.xlane.xlu0 %272
        %274 = vadd.xlane.f32.xlu0 %v218
        %v275 = vpop.xlane.xlu0 %274
        %276 = vadd.xlane.f32.xlu0 %v219
        %v277 = vpop.xlane.xlu0 %276
        %278 = vadd.xlane.f32.xlu0 %v220
        %v279 = vpop.xlane.xlu0 %278
        %280 = vadd.xlane.f32.xlu0 %v221
        %v281 = vpop.xlane.xlu0 %280
        %282 = vadd.xlane.f32.xlu0 %v222
        %v283 = vpop.xlane.xlu0 %282
        %284 = vadd.xlane.f32.xlu0 %v223
        %v285 = vpop.xlane.xlu0 %284
        %286 = vadd.xlane.f32.xlu0 %v224
        %v287 = vpop.xlane.xlu0 %286
        %288 = vadd.xlane.f32.xlu0 %v225
        %v289 = vpop.xlane.xlu0 %288
        %v290 = vadd.f32 %v227, 0.0
        %v291 = vadd.f32 %v229, 0.0
        %v292 = vadd.f32 %v231, 0.0
        %v293 = vadd.f32 %v233, 0.0
        %v294 = vadd.f32 %v235, 0.0
        %v295 = vadd.f32 %v237, 0.0
        %v296 = vadd.f32 %v239, 0.0
        %v297 = vadd.f32 %v241, 0.0
        %v298 = vadd.f32 %v243, 0.0
        %v299 = vadd.f32 %v245, 0.0
        %v300 = vadd.f32 %v247, 0.0
        %v301 = vadd.f32 %v249, 0.0
        %v302 = vadd.f32 %v251, 0.0
        %v303 = vadd.f32 %v253, 0.0
        %v304 = vadd.f32 %v255, 0.0
        %v305 = vadd.f32 %v257, 0.0
        %v306 = vadd.f32 %v259, 0.0
        %v307 = vadd.f32 %v261, 0.0
        %v308 = vadd.f32 %v263, 0.0
        %v309 = vadd.f32 %v265, 0.0
        %v310 = vadd.f32 %v267, 0.0
        %v311 = vadd.f32 %v269, 0.0
        %v312 = vadd.f32 %v271, 0.0
        %v313 = vadd.f32 %v273, 0.0
        %v314 = vadd.f32 %v275, 0.0
        %v315 = vadd.f32 %v277, 0.0
        %v316 = vadd.f32 %v279, 0.0
        %v317 = vadd.f32 %v281, 0.0
        %v318 = vadd.f32 %v283, 0.0
        %v319 = vadd.f32 %v285, 0.0
        %v320 = vadd.f32 %v287, 0.0
        %v321 = vadd.f32 %v289, 0.0
        %v322 = vld [vmem:[%s1] sm:$0xff]
        %v323 = vld [vmem:[%s1 + $0x8] sm:$0xff]
        %v324 = vld [vmem:[%s1 + $0x10] sm:$0xff]
        %v325 = vld [vmem:[%s1 + $0x18] sm:$0xff]
        %v326 = vld [vmem:[%s1 + $0x20] sm:$0xff]
        %v327 = vld [vmem:[%s1 + $0x28] sm:$0xff]
        %v328 = vld [vmem:[%s1 + $0x30] sm:$0xff]
        %v329 = vld [vmem:[%s1 + $0x38] sm:$0xff]
        %v362 = vlaneseq
        %v363 = vand.u32 %v362, 127
        %v364 = vperm.slane %v290, %v363
        %v365 = vadd.s32 %v363, 4294967288
        %v366 = vperm.slane %v291, %v365
        %vm367 = vcmask 130112
        %v368 = vsel %vm367, %v366, %v364
        %v369 = vadd.s32 %v363, 4294967280
        %v370 = vperm.slane %v292, %v369
        %vm371 = vcmask 195712
        %v372 = vsel %vm371, %v370, %v368
        %v373 = vadd.s32 %v363, 4294967272
        %v374 = vperm.slane %v293, %v373
        %vm375 = vcmask 261312
        %v376 = vsel %vm375, %v374, %v372
        %v377 = vadd.s32 %v363, 4294967264
        %v378 = vperm.slane %v294, %v377
        %vm379 = vcmask 326912
        %v380 = vsel %vm379, %v378, %v376
        %v381 = vadd.s32 %v363, 4294967256
        %v382 = vperm.slane %v295, %v381
        %vm383 = vcmask 392512
        %v384 = vsel %vm383, %v382, %v380
        %v385 = vadd.s32 %v363, 4294967248
        %v386 = vperm.slane %v296, %v385
        %vm387 = vcmask 458112
        %v388 = vsel %vm387, %v386, %v384
        %v389 = vadd.s32 %v363, 4294967240
        %v390 = vperm.slane %v297, %v389
        %vm391 = vcmask 523712
        %v392 = vsel %vm391, %v390, %v388
        %v393 = vperm.slane %v298, %v363
        %v394 = vperm.slane %v299, %v365
        %v395 = vsel %vm367, %v394, %v393
        %v396 = vperm.slane %v300, %v369
        %v397 = vsel %vm371, %v396, %v395
        %v398 = vperm.slane %v301, %v373
        %v399 = vsel %vm375, %v398, %v397
        %v400 = vperm.slane %v302, %v377
        %v401 = vsel %vm379, %v400, %v399
        %v402 = vperm.slane %v303, %v381
        %v403 = vsel %vm383, %v402, %v401
        %v404 = vperm.slane %v304, %v385
        %v405 = vsel %vm387, %v404, %v403
        %v406 = vperm.slane %v305, %v389
        %v407 = vsel %vm391, %v406, %v405
        %v408 = vperm.slane %v306, %v363
        %v409 = vperm.slane %v307, %v365
        %v410 = vsel %vm367, %v409, %v408
        %v411 = vperm.slane %v308, %v369
        %v412 = vsel %vm371, %v411, %v410
        %v413 = vperm.slane %v309, %v373
        %v414 = vsel %vm375, %v413, %v412
        %v415 = vperm.slane %v310, %v377
        %v416 = vsel %vm379, %v415, %v414
        %v417 = vperm.slane %v311, %v381
        %v418 = vsel %vm383, %v417, %v416
        %v419 = vperm.slane %v312, %v385
        %v420 = vsel %vm387, %v419, %v418
        %v421 = vperm.slane %v313, %v389
        %v422 = vsel %vm391, %v421, %v420
        %v423 = vperm.slane %v314, %v363
        %v424 = vperm.slane %v315, %v365
        %v425 = vsel %vm367, %v424, %v423
        %v426 = vperm.slane %v316, %v369
        %v427 = vsel %vm371, %v426, %v425
        %v428 = vperm.slane %v317, %v373
        %v429 = vsel %vm375, %v428, %v427
        %v430 = vperm.slane %v318, %v377
        %v431 = vsel %vm379, %v430, %v429
        %v432 = vperm.slane %v319, %v381
        %v433 = vsel %vm383, %v432, %v431
        %v434 = vperm.slane %v320, %v385
        %v435 = vsel %vm387, %v434, %v433
        %v436 = vperm.slane %v321, %v389
        %v437 = vsel %vm391, %v436, %v435
        %vm438 = vcmask 1041409
        %v439 = vsel %vm438, %v407, %v392
        %vm440 = vcmask 1042434
        %v441 = vsel %vm440, %v422, %v439
        %vm442 = vcmask 1043459
        %v443 = vsel %vm442, %v437, %v441
        %vm444 = vcmask 523264
        %v445 = vsel %vm444, %v443, 0
        %447 = vmatpush.msra.mxu0 0.0
        %448 = vmatpush.msra.mxu0 0.0
        %449 = vmatpush.msra.mxu0 0.0
        %450 = vmatpush.msra.mxu0 0.0
        %451 = vmatpush.msra.mxu0 0.0
        %452 = vmatpush.msra.mxu0 0.0
        %453 = vmatpush.msra.mxu0 0.0
        %454 = vmatpush.msra.mxu0 0.0
        %455 = vmatpush.msra.mxu0 %v329
        %456 = vmatpush.msra.mxu0 %v328
        %457 = vmatpush.msra.mxu0 %v327
        %458 = vmatpush.msra.mxu0 %v326
        %459 = vmatpush.msra.mxu0 %v325
        %460 = vmatpush.msra.mxu0 %v324
        %461 = vmatpush.msra.mxu0 %v323
        %462 = vmatpush.msra.mxu0 %v322
        %463 = vmatmul.f32.gmra.mxu0 %v445
        %v464 = vpop.f32.mrf.mxu0
        %v465 = vadd.f32 0.0, %v464
        %466 = vdwg.mxu0
        %v467 = vmax.f32 %v465, 0.0
        %v468 = vld [vmem:[%s2] sm:$0xf]
        %vm469 = vcmask 31744
        %v471 = vsel %vm469, %v467, 0
        %vm473 = vcmask 1043456
        %v475 = vsel %vm473, %v468, 0
        %477 = vmatpush.msra.mxu0 0.0
        %478 = vmatpush.msra.mxu0 0.0
        %479 = vmatpush.msra.mxu0 0.0
        %480 = vmatpush.msra.mxu0 0.0
        %481 = vmatpush.msra.mxu0 0.0
        %482 = vmatpush.msra.mxu0 0.0
        %483 = vmatpush.msra.mxu0 0.0
        %484 = vmatpush.msra.mxu0 0.0
        %485 = vmatpush.msra.mxu0 0.0
        %486 = vmatpush.msra.mxu0 0.0
        %487 = vmatpush.msra.mxu0 0.0
        %488 = vmatpush.msra.mxu0 0.0
        %489 = vmatpush.msra.mxu0 0.0
        %490 = vmatpush.msra.mxu0 0.0
        %491 = vmatpush.msra.mxu0 0.0
        %492 = vmatpush.msra.mxu0 %v475
        %493 = vmatmul.f32.gmra.mxu0 %v471
        %v494 = vpop.f32.mrf.mxu0
        %v495 = vadd.f32 0.0, %v494
        %496 = vdwg.mxu0
        %v497 = vxor.u32 %v495, 2147483648
        %v498 = vmul.f32 %v497, 1.442695
        %v499 = vpow.pop %v498
        %v500 = vadd.f32 %v499, 1.0
        %v501 = vrcp.pop %v500
        %v502 = vmul.f32 %v500, %v501
        %v503 = vsub.f32 1.0, %v502
        %v504 = vmul.f32 %v501, %v503
        %v505 = vadd.f32 %v501, %v504
        %vm506 = vweird.f32 %v500
        %vm507 = vweird.f32 %v501
        %vm508 = vmor %vm506, %vm507
        %v509 = vsel %vm508, %v501, %v505
        %v510 = vand.u32 2147483647, %v500
        %vm511 = vcmp.eq.f32.partialorder %v510, 8.507059e+37
        %v512 = vand.u32 %v500, 2147483648
        %v513 = vor.u32 1.1754944e-38, %v512
        %v514 = vsel %vm511, %v513, %v509
        %v515 = vmul.f32 1.0, %v514
        %v516 = vperm.slane %v515, 0
        %v517 = vlaneseq
        %v518 = vshrl.u32 %v517, 7
        %520 = vset.pattern.permute.xlu0 %v518
        %521 = vperm.xlu0 %520, %v516
        %v522 = vpop.permute.xlu0 %521
        %v523 = vlaneseq
        %v524 = vshrl.u32 %v523, 7
        %v525 = vadd.s32 %v524, 8
        %526 = vset.pattern.permute.xlu0 %v525
        %527 = vperm.xlu0 %526, %v516
        %v528 = vpop.permute.xlu0 %527
        %v529 = vlaneseq
        %v530 = vshrl.u32 %v529, 7
        %v531 = vadd.s32 %v530, 16
        %532 = vset.pattern.permute.xlu0 %v531
        %533 = vperm.xlu0 %532, %v516
        %v534 = vpop.permute.xlu0 %533
        %v535 = vlaneseq
        %v536 = vshrl.u32 %v535, 7
        %v537 = vadd.s32 %v536, 24
        %538 = vset.pattern.permute.xlu0 %v537
        %539 = vperm.xlu0 %538, %v516
        %v540 = vpop.permute.xlu0 %539
        %v541 = vlaneseq
        %v542 = vshrl.u32 %v541, 7
        %v543 = vadd.s32 %v542, 32
        %544 = vset.pattern.permute.xlu0 %v543
        %545 = vperm.xlu0 %544, %v516
        %v546 = vpop.permute.xlu0 %545
        %v547 = vlaneseq
        %v548 = vshrl.u32 %v547, 7
        %v549 = vadd.s32 %v548, 40
        %550 = vset.pattern.permute.xlu0 %v549
        %551 = vperm.xlu0 %550, %v516
        %v552 = vpop.permute.xlu0 %551
        %v553 = vlaneseq
        %v554 = vshrl.u32 %v553, 7
        %v555 = vadd.s32 %v554, 48
        %556 = vset.pattern.permute.xlu0 %v555
        %557 = vperm.xlu0 %556, %v516
        %v558 = vpop.permute.xlu0 %557
        %v559 = vlaneseq
        %v560 = vshrl.u32 %v559, 7
        %v561 = vadd.s32 %v560, 56
        %562 = vset.pattern.permute.xlu0 %v561
        %563 = vperm.xlu0 %562, %v516
        %v564 = vpop.permute.xlu0 %563
        %v565 = vperm.slane %v515, 1
        %v566 = vlaneseq
        %v567 = vshrl.u32 %v566, 7
        %569 = vset.pattern.permute.xlu0 %v567
        %570 = vperm.xlu0 %569, %v565
        %v571 = vpop.permute.xlu0 %570
        %v572 = vlaneseq
        %v573 = vshrl.u32 %v572, 7
        %v574 = vadd.s32 %v573, 8
        %575 = vset.pattern.permute.xlu0 %v574
        %576 = vperm.xlu0 %575, %v565
        %v577 = vpop.permute.xlu0 %576
        %v578 = vlaneseq
        %v579 = vshrl.u32 %v578, 7
        %v580 = vadd.s32 %v579, 16
        %581 = vset.pattern.permute.xlu0 %v580
        %582 = vperm.xlu0 %581, %v565
        %v583 = vpop.permute.xlu0 %582
        %v584 = vlaneseq
        %v585 = vshrl.u32 %v584, 7
        %v586 = vadd.s32 %v585, 24
        %587 = vset.pattern.permute.xlu0 %v586
        %588 = vperm.xlu0 %587, %v565
        %v589 = vpop.permute.xlu0 %588
        %v590 = vlaneseq
        %v591 = vshrl.u32 %v590, 7
        %v592 = vadd.s32 %v591, 32
        %593 = vset.pattern.permute.xlu0 %v592
        %594 = vperm.xlu0 %593, %v565
        %v595 = vpop.permute.xlu0 %594
        %v596 = vlaneseq
        %v597 = vshrl.u32 %v596, 7
        %v598 = vadd.s32 %v597, 40
        %599 = vset.pattern.permute.xlu0 %v598
        %600 = vperm.xlu0 %599, %v565
        %v601 = vpop.permute.xlu0 %600
        %v602 = vlaneseq
        %v603 = vshrl.u32 %v602, 7
        %v604 = vadd.s32 %v603, 48
        %605 = vset.pattern.permute.xlu0 %v604
        %606 = vperm.xlu0 %605, %v565
        %v607 = vpop.permute.xlu0 %606
        %v608 = vlaneseq
        %v609 = vshrl.u32 %v608, 7
        %v610 = vadd.s32 %v609, 56
        %611 = vset.pattern.permute.xlu0 %v610
        %612 = vperm.xlu0 %611, %v565
        %v613 = vpop.permute.xlu0 %612
        %v614 = vperm.slane %v515, 2
        %v615 = vlaneseq
        %v616 = vshrl.u32 %v615, 7
        %618 = vset.pattern.permute.xlu0 %v616
        %619 = vperm.xlu0 %618, %v614
        %v620 = vpop.permute.xlu0 %619
        %v621 = vlaneseq
        %v622 = vshrl.u32 %v621, 7
        %v623 = vadd.s32 %v622, 8
        %624 = vset.pattern.permute.xlu0 %v623
        %625 = vperm.xlu0 %624, %v614
        %v626 = vpop.permute.xlu0 %625
        %v627 = vlaneseq
        %v628 = vshrl.u32 %v627, 7
        %v629 = vadd.s32 %v628, 16
        %630 = vset.pattern.permute.xlu0 %v629
        %631 = vperm.xlu0 %630, %v614
        %v632 = vpop.permute.xlu0 %631
        %v633 = vlaneseq
        %v634 = vshrl.u32 %v633, 7
        %v635 = vadd.s32 %v634, 24
        %636 = vset.pattern.permute.xlu0 %v635
        %637 = vperm.xlu0 %636, %v614
        %v638 = vpop.permute.xlu0 %637
        %v639 = vlaneseq
        %v640 = vshrl.u32 %v639, 7
        %v641 = vadd.s32 %v640, 32
        %642 = vset.pattern.permute.xlu0 %v641
        %643 = vperm.xlu0 %642, %v614
        %v644 = vpop.permute.xlu0 %643
        %v645 = vlaneseq
        %v646 = vshrl.u32 %v645, 7
        %v647 = vadd.s32 %v646, 40
        %648 = vset.pattern.permute.xlu0 %v647
        %649 = vperm.xlu0 %648, %v614
        %v650 = vpop.permute.xlu0 %649
        %v651 = vlaneseq
        %v652 = vshrl.u32 %v651, 7
        %v653 = vadd.s32 %v652, 48
        %654 = vset.pattern.permute.xlu0 %v653
        %655 = vperm.xlu0 %654, %v614
        %v656 = vpop.permute.xlu0 %655
        %v657 = vlaneseq
        %v658 = vshrl.u32 %v657, 7
        %v659 = vadd.s32 %v658, 56
        %660 = vset.pattern.permute.xlu0 %v659
        %661 = vperm.xlu0 %660, %v614
        %v662 = vpop.permute.xlu0 %661
        %v663 = vperm.slane %v515, 3
        %v664 = vlaneseq
        %v665 = vshrl.u32 %v664, 7
        %667 = vset.pattern.permute.xlu0 %v665
        %668 = vperm.xlu0 %667, %v663
        %v669 = vpop.permute.xlu0 %668
        %v670 = vlaneseq
        %v671 = vshrl.u32 %v670, 7
        %v672 = vadd.s32 %v671, 8
        %673 = vset.pattern.permute.xlu0 %v672
        %674 = vperm.xlu0 %673, %v663
        %v675 = vpop.permute.xlu0 %674
        %v676 = vlaneseq
        %v677 = vshrl.u32 %v676, 7
        %v678 = vadd.s32 %v677, 16
        %679 = vset.pattern.permute.xlu0 %v678
        %680 = vperm.xlu0 %679, %v663
        %v681 = vpop.permute.xlu0 %680
        %v682 = vlaneseq
        %v683 = vshrl.u32 %v682, 7
        %v684 = vadd.s32 %v683, 24
        %685 = vset.pattern.permute.xlu0 %v684
        %686 = vperm.xlu0 %685, %v663
        %v687 = vpop.permute.xlu0 %686
        %v688 = vlaneseq
        %v689 = vshrl.u32 %v688, 7
        %v690 = vadd.s32 %v689, 32
        %691 = vset.pattern.permute.xlu0 %v690
        %692 = vperm.xlu0 %691, %v663
        %v693 = vpop.permute.xlu0 %692
        %v694 = vlaneseq
        %v695 = vshrl.u32 %v694, 7
        %v696 = vadd.s32 %v695, 40
        %697 = vset.pattern.permute.xlu0 %v696
        %698 = vperm.xlu0 %697, %v663
        %v699 = vpop.permute.xlu0 %698
        %v700 = vlaneseq
        %v701 = vshrl.u32 %v700, 7
        %v702 = vadd.s32 %v701, 48
        %703 = vset.pattern.permute.xlu0 %v702
        %704 = vperm.xlu0 %703, %v663
        %v705 = vpop.permute.xlu0 %704
        %v706 = vlaneseq
        %v707 = vshrl.u32 %v706, 7
        %v708 = vadd.s32 %v707, 56
        %709 = vset.pattern.permute.xlu0 %v708
        %710 = vperm.xlu0 %709, %v663
        %v711 = vpop.permute.xlu0 %710
        %v712 = vld [vmem:[%s168] sm:$0xff]
        %v713 = vld [vmem:[%s168 + $0x8] sm:$0xff]
        %v714 = vld [vmem:[%s168 + $0x10] sm:$0xff]
        %v715 = vld [vmem:[%s168 + $0x18] sm:$0xff]
        %v716 = vld [vmem:[%s168 + $0x20] sm:$0xff]
        %v717 = vld [vmem:[%s168 + $0x28] sm:$0xff]
        %v718 = vld [vmem:[%s168 + $0x30] sm:$0xff]
        %v719 = vld [vmem:[%s168 + $0x38] sm:$0xff]
        %v720 = vld [vmem:[%s168 + $0x40] sm:$0xff]
        %v721 = vld [vmem:[%s168 + $0x48] sm:$0xff]
        %v722 = vld [vmem:[%s168 + $0x50] sm:$0xff]
        %v723 = vld [vmem:[%s168 + $0x58] sm:$0xff]
        %v724 = vld [vmem:[%s168 + $0x60] sm:$0xff]
        %v725 = vld [vmem:[%s168 + $0x68] sm:$0xff]
        %v726 = vld [vmem:[%s168 + $0x70] sm:$0xff]
        %v727 = vld [vmem:[%s168 + $0x78] sm:$0xff]
        %v728 = vld [vmem:[%s168 + $0x80] sm:$0xff]
        %v729 = vld [vmem:[%s168 + $0x88] sm:$0xff]
        %v730 = vld [vmem:[%s168 + $0x90] sm:$0xff]
        %v731 = vld [vmem:[%s168 + $0x98] sm:$0xff]
        %v732 = vld [vmem:[%s168 + $0xa0] sm:$0xff]
        %v733 = vld [vmem:[%s168 + $0xa8] sm:$0xff]
        %v734 = vld [vmem:[%s168 + $0xb0] sm:$0xff]
        %v735 = vld [vmem:[%s168 + $0xb8] sm:$0xff]
        %v736 = vld [vmem:[%s168 + $0xc0] sm:$0xff]
        %v737 = vld [vmem:[%s168 + $0xc8] sm:$0xff]
        %v738 = vld [vmem:[%s168 + $0xd0] sm:$0xff]
        %v739 = vld [vmem:[%s168 + $0xd8] sm:$0xff]
        %v740 = vld [vmem:[%s168 + $0xe0] sm:$0xff]
        %v741 = vld [vmem:[%s168 + $0xe8] sm:$0xff]
        %v742 = vld [vmem:[%s168 + $0xf0] sm:$0xff]
        %v743 = vld [vmem:[%s168 + $0xf8] sm:$0xff]
        %v744 = vmul.f32 %v712, %v522
        %v745 = vmul.f32 %v713, %v528
        %v746 = vmul.f32 %v714, %v534
        %v747 = vmul.f32 %v715, %v540
        %v748 = vmul.f32 %v716, %v546
        %v749 = vmul.f32 %v717, %v552
        %v750 = vmul.f32 %v718, %v558
        %v751 = vmul.f32 %v719, %v564
        %v752 = vmul.f32 %v720, %v571
        %v753 = vmul.f32 %v721, %v577
        %v754 = vmul.f32 %v722, %v583
        %v755 = vmul.f32 %v723, %v589
        %v756 = vmul.f32 %v724, %v595
        %v757 = vmul.f32 %v725, %v601
        %v758 = vmul.f32 %v726, %v607
        %v759 = vmul.f32 %v727, %v613
        %v760 = vmul.f32 %v728, %v620
        %v761 = vmul.f32 %v729, %v626
        %v762 = vmul.f32 %v730, %v632
        %v763 = vmul.f32 %v731, %v638
        %v764 = vmul.f32 %v732, %v644
        %v765 = vmul.f32 %v733, %v650
        %v766 = vmul.f32 %v734, %v656
        %v767 = vmul.f32 %v735, %v662
        %v768 = vmul.f32 %v736, %v669
        %v769 = vmul.f32 %v737, %v675
        %v770 = vmul.f32 %v738, %v681
        %v771 = vmul.f32 %v739, %v687
        %v772 = vmul.f32 %v740, %v693
        %v773 = vmul.f32 %v741, %v699
        %v774 = vmul.f32 %v742, %v705
        %v775 = vmul.f32 %v743, %v711
        %776 = vst [vmem:[%s191] sm:$0xff] %v744
        %777 = vst [vmem:[%s191 + $0x8] sm:$0xff] %v745
        %778 = vst [vmem:[%s191 + $0x10] sm:$0xff] %v746
        %779 = vst [vmem:[%s191 + $0x18] sm:$0xff] %v747
        %780 = vst [vmem:[%s191 + $0x20] sm:$0xff] %v748
        %781 = vst [vmem:[%s191 + $0x28] sm:$0xff] %v749
        %782 = vst [vmem:[%s191 + $0x30] sm:$0xff] %v750
        %783 = vst [vmem:[%s191 + $0x38] sm:$0xff] %v751
        %784 = vst [vmem:[%s191 + $0x40] sm:$0xff] %v752
        %785 = vst [vmem:[%s191 + $0x48] sm:$0xff] %v753
        %786 = vst [vmem:[%s191 + $0x50] sm:$0xff] %v754
        %787 = vst [vmem:[%s191 + $0x58] sm:$0xff] %v755
        %788 = vst [vmem:[%s191 + $0x60] sm:$0xff] %v756
        %789 = vst [vmem:[%s191 + $0x68] sm:$0xff] %v757
        %790 = vst [vmem:[%s191 + $0x70] sm:$0xff] %v758
        %791 = vst [vmem:[%s191 + $0x78] sm:$0xff] %v759
        %792 = vst [vmem:[%s191 + $0x80] sm:$0xff] %v760
        %793 = vst [vmem:[%s191 + $0x88] sm:$0xff] %v761
        %794 = vst [vmem:[%s191 + $0x90] sm:$0xff] %v762
        %795 = vst [vmem:[%s191 + $0x98] sm:$0xff] %v763
        %796 = vst [vmem:[%s191 + $0xa0] sm:$0xff] %v764
        %797 = vst [vmem:[%s191 + $0xa8] sm:$0xff] %v765
        %798 = vst [vmem:[%s191 + $0xb0] sm:$0xff] %v766
        %799 = vst [vmem:[%s191 + $0xb8] sm:$0xff] %v767
        %800 = vst [vmem:[%s191 + $0xc0] sm:$0xff] %v768
        %801 = vst [vmem:[%s191 + $0xc8] sm:$0xff] %v769
        %802 = vst [vmem:[%s191 + $0xd0] sm:$0xff] %v770
        %803 = vst [vmem:[%s191 + $0xd8] sm:$0xff] %v771
        %804 = vst [vmem:[%s191 + $0xe0] sm:$0xff] %v772
        %805 = vst [vmem:[%s191 + $0xe8] sm:$0xff] %v773
        %806 = vst [vmem:[%s191 + $0xf0] sm:$0xff] %v774
        %807 = vst [vmem:[%s191 + $0xf8] sm:$0xff] %v775
        %s808 = sand.u32 %s96, 1
        %s809 = scalar_lea.sflag [#allocation4], %s808
        %s810 = sand.u32 %s96, 1
        %s811 = smul.addr %s810, 256
        %s812 = scalar_lea.vmem [#allocation5], %s811
        // Predicated region
        $region37: #{tpu_custom_call.1} parent=31 // pred_check
          %p813 = pneg %p106
        $region38: #{tpu_custom_call.1} parent=31 // pred_check_branch
          %815 = sbr.rel (%p813) target = $region40
        $region39: #{tpu_custom_call.1} parent=31 // pred_region
          %s816 = smul.u32 4, %s20
          %818 = vsyncadd %s809, 0
          %s819 = smul.addr %s816, 8
          %s820 = smul.addr %s819, 8
          %s821 = scalar_lea.hbm %s3, %s820
          %s822 = sshll.u32 %s812, 4
          %s823 = int_to_ptr.vmem [resolvable:$true] %s822
          %s824 = sshll.u32 %s821, 4
          %s825 = int_to_ptr.hbm [resolvable:$true] %s824
          %830 = dma.vmem_to_hbm [thread:$0]  %s823, 4096, %s825, %s809, 128, 128, 8
        $region40: #{tpu_custom_call.1} parent=31 // pred_fallthru
          _
      $region32: #{tpu_custom_call.1} parent=5 // pred_fallthru
        _
      %p831 = scmp.le.s32.totalorder 2, %s15
      // Predicated region
      $region41: #{tpu_custom_call.1} parent=5 // pred_check
        %p832 = pneg %p831
      $region42: #{tpu_custom_call.1} parent=5 // pred_check_branch
        %834 = sbr.rel (%p832) target = $region44
      $region43: #{tpu_custom_call.1} parent=5 // pred_region
        %s835 = ssub.s32 %s15, 2
        // Predicated region
        $region45: #{tpu_custom_call.1} parent=43 // pred_check
          %p836 = pneg %p112
        $region46: #{tpu_custom_call.1} parent=43 // pred_check_branch
          %838 = sbr.rel (%p836) target = $region48
        $region47: #{tpu_custom_call.1} parent=43 // pred_region
          %s839 = sand.u32 %s97, 1
          %s840 = scalar_lea.sflag [#allocation4], %s839
          %s841 = sand.u32 %s97, 1
          %s842 = smul.addr %s841, 256
          %s843 = scalar_lea.vmem [#allocation5], %s842
          %845 = dma.done %s840, 4096
        $region48: #{tpu_custom_call.1} parent=43 // pred_fallthru
          _
      $region44: #{tpu_custom_call.1} parent=5 // pred_fallthru
        _
    $region6: #{tpu_custom_call.1} parent=1 // loop_footer
      %s19 = sadd.s32 1, %s15
    $region7: #{tpu_custom_call.1} parent=1 // loop_footer_branch
      %14 = sbr.rel target = $region3
    $region8: #{tpu_custom_call.1} parent=1 // loop_exit
      _
    %846 = vsyncpa [#allocation3], 1
    %s847 = scalar_lea.sflag [#allocation3], 1
    %848 = vsyncpa %s847, 1
    %849 = vsyncpa [#allocation4], 1
    %s850 = scalar_lea.sflag [#allocation4], 1
    %851 = vsyncpa %s850, 1

</llo_original>
